<compile_context>
chip_gen: v7x
topology: tpu7x:2x2x1
jax: 0.10.0
libtpu: 0.0.40
codegen_flags: <defaults>
</compile_context>

<pallas_src>
import functools

import jax
import jax.numpy as jnp
from jax.experimental import pallas as pl
from jax.experimental.pallas import tpu as pltpu

COMPUTE_DTYPE = jnp.bfloat16     # MXU operand dtype; accumulation stays f32


def _round_up(x, m):
    return ((x + m - 1) // m) * m


def _vmem_budget_bytes():
    """Scoped-VMEM request derived from the actual chip, leaving headroom for
    compiler scratch / semaphores (v5e/v6e: 128 MiB -> 96; v7x: 64 MiB -> 48)."""
    try:
        cap = int(pltpu.get_tpu_info().vmem_capacity_bytes)
    except Exception:
        cap = 64 * 1024 * 1024          # unknown chip: assume the smallest VMEM
    return (cap * 3) // 4


def _single_buffered_spec(block_shape, index_map):
    """BlockSpec for a resident block (index constant along the inner grid
    axis): one pipeline buffer is enough; the default two waste VMEM.  Falls
    back to a default BlockSpec if this Pallas build lacks pipeline_mode."""
    try:
        return pl.BlockSpec(block_shape, index_map, pipeline_mode=pl.Buffered(1))
    except Exception:
        return pl.BlockSpec(block_shape, index_map)


# ---------------------------------------------------------------------------
# Kernel 1: fused input projection
#   gx[m, :] = sum_d x[d, m, :] @ W_ih_t[d] + bias, zeroed for padded-time rows
# ---------------------------------------------------------------------------
def _inproj_kernel(x_ref, w_ref, b_ref, o_ref, *, n_dirs, block_m, valid_rows):
    acc = jnp.dot(x_ref[0], w_ref[0], preferred_element_type=jnp.float32)
    for d in range(1, n_dirs):                       # static (1 or 2)
        acc += jnp.dot(x_ref[d], w_ref[d], preferred_element_type=jnp.float32)
    acc = acc + b_ref[...]
    # Zero rows belonging to padded time steps: with gx == 0 and h = c = 0 an
    # LSTM step is an exact no-op, so the reverse direction's warm-up through
    # the padded tail cannot perturb the state.
    row = (pl.program_id(0) * block_m
           + jax.lax.broadcasted_iota(jnp.int32, (block_m, 1), 0))
    o_ref[...] = jnp.where(row < valid_rows, acc, 0.0).astype(o_ref.dtype)


def _proj_tiles(M, N, d_in, n_dirs, budget):
    big = budget >= 80 * 1024 * 1024                 # v5e/v6e-class VMEM
    tm = min(1024 if big else 512, _round_up(M, 8))
    tn = min(512 if big else 256, N)                 # N = 8H is a 128-multiple

    def usage(tm_, tn_):                             # double-buffered working set
        return 2 * (n_dirs * tm_ * d_in * 2 + n_dirs * d_in * tn_ * 2
                    + tn_ * 4 + tm_ * tn_ * 2)

    while tm > 8 and usage(tm, tn) > budget // 2:
        tm = max(8, _round_up(tm // 2, 8))
    while tn > 128 and usage(tm, tn) > budget // 2:
        tn = max(128, (tn // 2 // 128) * 128)
    return tm, tn


def input_projection(x, w_ih_t, bias, valid_rows, out_dtype, budget):
    """x: (n_dirs, M, Din) bf16, w_ih_t: (n_dirs, Din, 8H) -> (M, 8H) bf16."""
    n_dirs, M, Din = x.shape
    N = w_ih_t.shape[-1]
    tm, tn = _proj_tiles(M, N, Din, n_dirs, budget)
    bytes_accessed = (x.size * x.dtype.itemsize
                      + w_ih_t.size * w_ih_t.dtype.itemsize
                      + N * 4 + M * N * jnp.dtype(out_dtype).itemsize)
    return pl.pallas_call(
        functools.partial(_inproj_kernel, n_dirs=n_dirs, block_m=tm,
                          valid_rows=valid_rows),
        out_shape=jax.ShapeDtypeStruct((M, N), out_dtype),
        grid=(pl.cdiv(M, tm), pl.cdiv(N, tn)),
        in_specs=[
            pl.BlockSpec((n_dirs, tm, Din), lambda i, j: (0, i, 0)),
            pl.BlockSpec((n_dirs, Din, tn), lambda i, j: (0, 0, j)),
            pl.BlockSpec((1, tn), lambda i, j: (0, j)),
        ],
        out_specs=pl.BlockSpec((tm, tn), lambda i, j: (i, j)),
        compiler_params=pltpu.CompilerParams(
            dimension_semantics=("parallel", "parallel"),
            vmem_limit_bytes=budget),
        cost_estimate=pl.CostEstimate(
            flops=2 * n_dirs * M * Din * N, transcendentals=0,
            bytes_accessed=bytes_accessed),
    )(x, w_ih_t, bias)


# ---------------------------------------------------------------------------
# Kernel 2: bidirectional recurrence, grid = (direction "parallel", chunk "arbitrary")
# ---------------------------------------------------------------------------
def _bilstm_kernel(gx_ref, whh_ref, out_ref, h_ref, c_ref, *, hidden, t_chunk):
    H = hidden
    d = pl.program_id(0)                 # direction: 0 = forward, 1 = reverse
    s = pl.program_id(1)                 # chunk index in this direction's order

    @pl.when(s == 0)
    def _init():
        h_ref[...] = jnp.zeros_like(h_ref)
        c_ref[...] = jnp.zeros_like(c_ref)

    whh = whh_ref[...]                   # (H, 4H) resident, compute dtype
    cdt = whh.dtype

    def sig(x):                          # sigmoid via one EUP tanh
        return 0.5 * jnp.tanh(0.5 * x) + 0.5

    def body(j, carry):
        # Forward walks the chunk 0..t_chunk-1; reverse walks it back-to-front
        # (its chunks were already selected back-to-front by the index_map).
        jl = j + d * (t_chunk - 1 - 2 * j)
        gates = gx_ref[jl].astype(jnp.float32) + jnp.dot(
            h_ref[...].astype(cdt), whh, preferred_element_type=jnp.float32)
        i = sig(gates[:, 0 * H:1 * H])   # PyTorch gate order [i, f, g, o]
        f = sig(gates[:, 1 * H:2 * H])
        g = jnp.tanh(gates[:, 2 * H:3 * H])
        o = sig(gates[:, 3 * H:4 * H])
        c_new = f * c_ref[...] + i * g
        h_new = o * jnp.tanh(c_new)
        c_ref[...] = c_new
        h_ref[...] = h_new
        out_ref[jl] = h_new.astype(out_ref.dtype)
        return carry

    jax.lax.fori_loop(0, t_chunk, body, 0, unroll=2)   # capped unroll


def _pick_t_chunk(T, Bp, H, budget):
    per_step = 2 * (Bp * 4 * H + Bp * H) * 2     # gx + out blocks, bf16, 2 buffers
    fixed = 2 * H * 4 * H * 2 + 2 * Bp * H * 4 + (2 << 20)   # W_hh + h/c + slack
    avail = max(budget // 2 - fixed, per_step)
    return int(max(1, min(32, T, avail // per_step)))


def bilstm_layer(gx, w_hh_t, hidden, t_chunk, budget):
    """Recurrence over gx (Tp, Bp, 8H) -> (2, Tp, Bp, H) bf16 (direction-major)."""
    Tp, Bp, G = gx.shape
    H = hidden
    assert G == 8 * H and Tp % t_chunk == 0
    ns = Tp // t_chunk

    # Forward consumes chunk s, reverse consumes chunk ns-1-s at grid step s.
    def t_idx(d, s):
        return s + d * (ns - 1 - 2 * s)

    bytes_accessed = (gx.size * gx.dtype.itemsize
                      + 2 * Tp * Bp * H * 2
                      + w_hh_t.size * w_hh_t.dtype.itemsize)

    return pl.pallas_call(
        functools.partial(_bilstm_kernel, hidden=H, t_chunk=t_chunk),
        out_shape=jax.ShapeDtypeStruct((2, Tp, Bp, H), gx.dtype),   # bf16 output
        grid=(2, ns),
        in_specs=[
            pl.BlockSpec((t_chunk, Bp, 4 * H),
                         lambda d, s: (t_idx(d, s), 0, d)),      # this dir's gates
            _single_buffered_spec((None, H, 4 * H),
                                  lambda d, s: (d, 0, 0)),       # resident W_hh^T
        ],
        out_specs=pl.BlockSpec((None, t_chunk, Bp, H),
                               lambda d, s: (d, t_idx(d, s), 0, 0)),
        scratch_shapes=[
            pltpu.VMEM((Bp, H), jnp.float32),   # h state (per direction / core)
            pltpu.VMEM((Bp, H), jnp.float32),   # c state
        ],
        compiler_params=pltpu.CompilerParams(
            dimension_semantics=("parallel", "arbitrary"),
            vmem_limit_bytes=budget),
        cost_estimate=pl.CostEstimate(
            flops=2 * 2 * Tp * Bp * H * 4 * H,
            transcendentals=5 * 2 * Tp * Bp * H,
            bytes_accessed=bytes_accessed),
    )(gx, w_hh_t)


# ---------------------------------------------------------------------------
# Full encoder forward (embedding -> [dropout=id] -> bidirectional LSTM stack)
# ---------------------------------------------------------------------------
def lstm_encoder_forward(params, token_ids, *, batch_multiple=8):
    H = params["nhid"]
    cdt = params["compute_dtype"]
    T, B = token_ids.shape
    assert H % 32 == 0, "nhid must be a multiple of 32 (4H lane alignment)"

    budget = _vmem_budget_bytes()
    # Batch padded to a sublane multiple; raise batch_multiple toward the MXU
    # granule when the recurrence (not HBM traffic) is the bottleneck.
    Bp = _round_up(B, batch_multiple)
    t_chunk = _pick_t_chunk(T, Bp, H, budget)
    Tp = _round_up(T, t_chunk)

    tok = token_ids
    if (Tp, Bp) != (T, B):
        tok = jnp.pad(tok, ((0, Tp - T), (0, Bp - B)))

    emb = jnp.take(params["embedding"], tok, axis=0)     # (Tp, Bp, E) gather (glue)
    x = emb.astype(cdt).reshape(1, Tp * Bp, -1)          # dropout: identity (eval)

    valid_rows = T * Bp                                  # rows of real time steps
    out = None
    for p in params["layers"]:
        gx = input_projection(x, p["w_ih_t"], p["bias"], valid_rows, cdt, budget)
        out = bilstm_layer(gx.reshape(Tp, Bp, 8 * H), p["w_hh_t"], H, t_chunk,
                           budget)                       # (2, Tp, Bp, H) bf16
        x = out.reshape(2, Tp * Bp, H)                   # no concat between layers
    # Returned output: (T, B, 2H) with [fwd, rev] on the feature axis, f32.
    y = jnp.transpose(out, (1, 2, 0, 3)).astype(jnp.float32)
    return y.reshape(Tp, Bp, 2 * H)[:T, :B]


# ---------------------------------------------------------------------------
# Pure-JAX reference (same math & same bf16 MXU-operand quantization)
# ---------------------------------------------------------------------------
def _lstm_ref_dir(x, p, H, reverse, cdt):
    T, B, D = x.shape
    w_ih_t = p["w_ih"].T.astype(cdt)
    w_hh_t = p["w_hh"].T.astype(cdt)
    b = (p["b_ih"] + p["b_hh"]).astype(jnp.float32)
    gx = jnp.dot(x.astype(cdt).reshape(T * B, D), w_ih_t,
                 preferred_element_type=jnp.float32) + b
    gx = gx.astype(cdt).reshape(T, B, 4 * H)

    def step(carry, gx_t):
        h, c = carry
        gates = gx_t.astype(jnp.float32) + jnp.dot(
            h.astype(cdt), w_hh_t, preferred_element_type=jnp.float32)
        i = jax.nn.sigmoid(gates[:, :H])
        f = jax.nn.sigmoid(gates[:, H:2 * H])
        g = jnp.tanh(gates[:, 2 * H:3 * H])
        o = jax.nn.sigmoid(gates[:, 3 * H:])
        c = f * c + i * g
        h = o * jnp.tanh(c)
        return (h, c), h

    xs = gx[::-1] if reverse else gx
    init = (jnp.zeros((B, H), jnp.float32), jnp.zeros((B, H), jnp.float32))
    _, hs = jax.lax.scan(step, init, xs)
    return hs[::-1] if reverse else hs


def lstm_encoder_ref(raw, token_ids, cdt):
    x = raw["embedding"][token_ids].astype(jnp.float32)
    H = raw["nhid"]
    for layer in range(raw["nlayers"]):
        outs = [
            _lstm_ref_dir(x, raw["lstm"][(layer, "fwd")], H, False, cdt),
            _lstm_ref_dir(x, raw["lstm"][(layer, "rev")], H, True, cdt),
        ]
        x = jnp.concatenate(outs, axis=-1)
    return x


# ---------------------------------------------------------------------------
# Parameter construction (shapes per nn.Embedding / nn.LSTM) and packing
# ---------------------------------------------------------------------------
def make_params(key, vocab, emb_dim, nhid, nlayers):
    keys = iter(jax.random.split(key, 2 + nlayers * 2 * 4))
    params = {
        "nhid": nhid,
        "nlayers": nlayers,
        "embedding": jax.random.normal(next(keys), (vocab, emb_dim),
                                       jnp.float32) * 0.1,
        "lstm": {},
    }
    bound = 1.0 / (nhid ** 0.5)
    for layer in range(nlayers):
        in_dim = emb_dim if layer == 0 else 2 * nhid
        for direction in ("fwd", "rev"):
            params["lstm"][(layer, direction)] = {
                "w_ih": jax.random.uniform(next(keys), (4 * nhid, in_dim),
                                           jnp.float32, -bound, bound),
                "w_hh": jax.random.uniform(next(keys), (4 * nhid, nhid),
                                           jnp.float32, -bound, bound),
                "b_ih": jax.random.uniform(next(keys), (4 * nhid,),
                                           jnp.float32, -bound, bound),
                "b_hh": jax.random.uniform(next(keys), (4 * nhid,),
                                           jnp.float32, -bound, bound),
            }
    return params


def pack_params(raw, compute_dtype):
    """Pre-transpose weights, fuse biases and both directions' weight slabs."""
    H = raw["nhid"]
    packed = {"nhid": H, "nlayers": raw["nlayers"],
              "compute_dtype": compute_dtype,
              "embedding": raw["embedding"], "layers": []}
    for layer in range(raw["nlayers"]):
        pf = raw["lstm"][(layer, "fwd")]
        pr = raw["lstm"][(layer, "rev")]
        d_in = pf["w_ih"].shape[1]                 # E for layer 0, 2H afterwards
        n_dirs_in = 1 if layer == 0 else 2
        w_ih_t = jnp.concatenate([pf["w_ih"].T, pr["w_ih"].T], axis=1)  # (D, 8H)
        w_ih_t = w_ih_t.reshape(n_dirs_in, d_in // n_dirs_in, 8 * H)
        bias = jnp.concatenate([pf["b_ih"] + pf["b_hh"],
                                pr["b_ih"] + pr["b_hh"]])[None, :]      # (1, 8H)
        w_hh_t = jnp.stack([pf["w_hh"].T, pr["w_hh"].T], axis=0)        # (2, H, 4H)
        packed["layers"].append({
            "w_ih_t": w_ih_t.astype(compute_dtype),
            "bias": bias.astype(jnp.float32),
            "w_hh_t": w_hh_t.astype(compute_dtype),
        })
    return packed


if __name__ == "__main__":
    VOCAB, EMB_DIM, NHID, NLAYERS = 50, 64, 32, 2
    T, B = 8, 2

    key = jax.random.PRNGKey(0)
    pkey, ikey = jax.random.split(key)
    raw = make_params(pkey, VOCAB, EMB_DIM, NHID, NLAYERS)
    params = pack_params(raw, COMPUTE_DTYPE)
    token_ids = jax.random.randint(ikey, (T, B), 0, VOCAB, dtype=jnp.int32)

    out = jax.block_until_ready(lstm_encoder_forward(params, token_ids))
    assert out.shape == (T, B, 2 * NHID), out.shape

    ref = jax.block_until_ready(lstm_encoder_ref(raw, token_ids, COMPUTE_DTYPE))
    assert jnp.allclose(out, ref, atol=2e-2, rtol=2e-2), (
        float(jnp.max(jnp.abs(out - ref))))

    print("KERNEL_OK")
</pallas_src>

<mosaic_0001>
module attributes {stable_mosaic.version = 11 : i64} {
  func.func @_inproj_kernel(%arg0: i32, %arg1: i32, %arg2: memref<1x64x64xbf16, #tpu.memory_space<vmem>>, %arg3: memref<1x64x256xbf16, #tpu.memory_space<vmem>>, %arg4: memref<1x256xf32, #tpu.memory_space<vmem>>, %arg5: memref<64x256xbf16, #tpu.memory_space<vmem>>) attributes {dimension_semantics = [#tpu.dimension_semantics<parallel>, #tpu.dimension_semantics<parallel>], iteration_bounds = array<i64: 1, 1>, scalar_prefetch = 0 : i64, scratch_operands = 0 : i64, tpu.core_type = #tpu.core_type<tc>, window_params = [{transform_indices = @transform_0, window_bounds = array<i64: 1, 64, 64>}, {transform_indices = @transform_1, window_bounds = array<i64: 1, 64, 256>}, {transform_indices = @transform_2, window_bounds = array<i64: 1, 256>}, {transform_indices = @transform_3, window_bounds = array<i64: 64, 256>}]} {
    %c0 = arith.constant 0 : index
    %c0_0 = arith.constant 0 : index
    %c0_1 = arith.constant 0 : index
    %0 = vector.load %arg2[%c0, %c0_0, %c0_1] : memref<1x64x64xbf16, #tpu.memory_space<vmem>>, vector<1x64x64xbf16>
    %1 = vector.shape_cast %0 : vector<1x64x64xbf16> to vector<64x64xbf16>
    %c0_2 = arith.constant 0 : index
    %c0_3 = arith.constant 0 : index
    %c0_4 = arith.constant 0 : index
    %2 = vector.load %arg3[%c0_2, %c0_3, %c0_4] : memref<1x64x256xbf16, #tpu.memory_space<vmem>>, vector<1x64x256xbf16>
    %3 = vector.shape_cast %2 : vector<1x64x256xbf16> to vector<64x256xbf16>
    %cst = arith.constant dense<0.000000e+00> : vector<64x256xf32>
    %4 = tpu.matmul %1, %3, %cst {dimension_numbers = #tpu.dot_dimension_numbers<[1], [0], [0], [1], [0, 0, 1, 1], [], []>} : vector<64x64xbf16>, vector<64x256xbf16>, vector<64x256xf32> -> vector<64x256xf32>
    %c0_5 = arith.constant 0 : index
    %c0_6 = arith.constant 0 : index
    %5 = vector.load %arg4[%c0_5, %c0_6] : memref<1x256xf32, #tpu.memory_space<vmem>>, vector<1x256xf32>
    %6 = vector.broadcast %5 : vector<1x256xf32> to vector<64x256xf32>
    %7 = arith.addf %4, %6 : vector<64x256xf32>
    %c64_i32 = arith.constant 64 : i32
    %8 = arith.muli %arg0, %c64_i32 : i32
    %9 = tpu.iota {dimensions = array<i32: 0>} : vector<64x1xi32>
    %10 = vector.broadcast %8 : i32 to vector<64x1xi32>
    %11 = arith.addi %10, %9 : vector<64x1xi32>
    %c64_i32_7 = arith.constant 64 : i32
    %12 = vector.broadcast %c64_i32_7 : i32 to vector<64x1xi32>
    %13 = arith.cmpi slt, %11, %12 : vector<64x1xi32>
    %cst_8 = arith.constant 0.000000e+00 : f32
    %14 = vector.shape_cast %13 : vector<64x1xi1> to vector<64x1xi1>
    %15 = vector.broadcast %14 : vector<64x1xi1> to vector<64x256xi1>
    %16 = vector.broadcast %cst_8 : f32 to vector<64x256xf32>
    %17 = arith.select %15, %7, %16 : vector<64x256xi1>, vector<64x256xf32>
    %18 = arith.truncf %17 : vector<64x256xf32> to vector<64x256xbf16>
    %c0_9 = arith.constant 0 : index
    %c0_10 = arith.constant 0 : index
    %19 = vector.load %arg5[%c0_9, %c0_10] : memref<64x256xbf16, #tpu.memory_space<vmem>>, vector<64x256xbf16>
    tpu.vector_store %arg5[%c0_9, %c0_10], %18 {strides = array<i32>} : memref<64x256xbf16, #tpu.memory_space<vmem>>, vector<64x256xbf16>,
    return
  }
  func.func @transform_0(%arg0: i32, %arg1: i32) -> (i32, i32, i32) {
    %c0_i32 = arith.constant 0 : i32
    %c0_i32_0 = arith.constant 0 : i32
    %c0_i32_1 = arith.constant 0 : i32
    return %c0_i32, %arg0, %c0_i32_0 : i32, i32, i32
  }
  func.func @transform_1(%arg0: i32, %arg1: i32) -> (i32, i32, i32) {
    %c0_i32 = arith.constant 0 : i32
    %c0_i32_0 = arith.constant 0 : i32
    %c0_i32_1 = arith.constant 0 : i32
    return %c0_i32, %c0_i32_0, %arg1 : i32, i32, i32
  }
  func.func @transform_2(%arg0: i32, %arg1: i32) -> (i32, i32) {
    %c0_i32 = arith.constant 0 : i32
    %c0_i32_0 = arith.constant 0 : i32
    return %c0_i32, %arg1 : i32, i32
  }
  func.func @transform_3(%arg0: i32, %arg1: i32) -> (i32, i32) {
    %c0_i32 = arith.constant 0 : i32
    return %arg0, %arg1 : i32, i32
  }
}

</mosaic_0001>

<llo_original>
// kernel: tpu_custom_call.1
$region0: #{tpu_custom_call.1}
  #allocation0 [shape = 'u32[]', space=smem, size = 0x4, offset = 0x4, fixed_abs, tag = 'smem constant byte address 0x4 - core index']
  #allocation1 [shape = 'u32[144,128]{1,0:T(1,128)}', space=vmem, size = 0x12000, scoped, tag = 'internal scratch']
  %s0 = inlined_call_operand.hbm [shape: bf16[1,64,64], index: 0, kind: input, shape index: {}]
  %s1 = inlined_call_operand.hbm [shape: bf16[1,64,256], index: 1, kind: input, shape index: {}]
  %s2 = inlined_call_operand.vmem [shape: f32[1,256], index: 2, kind: input, shape index: {}]
  %s3 = inlined_call_operand.hbm [shape: bf16[64,256], index: 3, kind: output, shape index: {}]
  %s4 = sld [smem:[#allocation0]]
  $region30: #{tpu_custom_call.1} parent=0
    _
  %s6 = ssub.s32 1, %s4
  %s7 = scalar_select 0, %s6, %s4
  $region1: #{tpu_custom_call.1} parent=0
    #allocation2 [shape = 'u8[16384]{0}', space=vmem, size = 0x4000, scoped, tag = 'input window, operand 0, single buffered']
    #allocation3 [shape = 's32[1]{0}', space=sflag, size = 0x4, scoped, tag = 'scoped memory for tpu_custom_call.1']
    #allocation4 [shape = 's32[1]{0}', space=sflag, size = 0x4, scoped, tag = 'scoped memory for tpu_custom_call.1']
    #allocation5 [shape = 'u8[32768]{0}', space=vmem, size = 0x8000, scoped, tag = 'input window, operand 1, single buffered']
    #allocation6 [shape = 's32[1]{0}', space=sflag, size = 0x4, scoped, tag = 'scoped memory for tpu_custom_call.1']
    #allocation7 [shape = 'u8[32768]{0}', space=vmem, size = 0x8000, scoped, tag = 'output window, operand 0, single buffered']
    %8 = vsyncpa [#allocation3], 0
    %9 = vsyncpa [#allocation6], 0
    %10 = vsyncpa [#allocation4], 0
    // Predicated region
    $region2: #{tpu_custom_call.1} parent=1 // pred_check
      _
    $region3: #{tpu_custom_call.1} parent=1 // pred_check_branch
      %12 = sbr.rel (0) target = $region5
    $region4: #{tpu_custom_call.1} parent=1 // pred_region
      %s14 = ssub.s32 512, 512
      %15 = vsyncadd [#allocation3], %s14
      %s16 = sshll.u32 [#allocation2], 4
      %s17 = int_to_ptr.vmem [resolvable:$true] %s16
      %22 = dma.hbm_to_vmem [thread:$0]  %s0, 512, %s17, [#allocation3], 64, 64, 4
    $region5: #{tpu_custom_call.1} parent=1 // pred_fallthru
      _
    // Predicated region
    $region6: #{tpu_custom_call.1} parent=1 // pred_check
      _
    $region7: #{tpu_custom_call.1} parent=1 // pred_check_branch
      %24 = sbr.rel (0) target = $region9
    $region8: #{tpu_custom_call.1} parent=1 // pred_region
      %s26 = ssub.s32 1024, 1024
      %27 = vsyncadd [#allocation6], %s26
      %s28 = sshll.u32 [#allocation5], 4
      %s29 = int_to_ptr.vmem [resolvable:$true] %s28
      %34 = dma.hbm_to_vmem [thread:$0]  %s1, 1024, %s29, [#allocation6], 128, 128, 8
    $region9: #{tpu_custom_call.1} parent=1 // pred_fallthru
      _
    // Predicated region
    $region10: #{tpu_custom_call.1} parent=1 // pred_check
      _
    $region11: #{tpu_custom_call.1} parent=1 // pred_check_branch
      %36 = sbr.rel (0) target = $region13
    $region12: #{tpu_custom_call.1} parent=1 // pred_region
      _
    $region13: #{tpu_custom_call.1} parent=1 // pred_fallthru
      _
    // Predicated region
    $region14: #{tpu_custom_call.1} parent=1 // pred_check
      _
    $region15: #{tpu_custom_call.1} parent=1 // pred_check_branch
      %38 = sbr.rel (0) target = $region17
    $region16: #{tpu_custom_call.1} parent=1 // pred_region
      %39 = dma.done [#allocation3], 512
    $region17: #{tpu_custom_call.1} parent=1 // pred_fallthru
      _
    // Predicated region
    $region18: #{tpu_custom_call.1} parent=1 // pred_check
      _
    $region19: #{tpu_custom_call.1} parent=1 // pred_check_branch
      %41 = sbr.rel (0) target = $region21
    $region20: #{tpu_custom_call.1} parent=1 // pred_region
      %42 = dma.done [#allocation6], 1024
    $region21: #{tpu_custom_call.1} parent=1 // pred_fallthru
      _
    %v44 = vld [vmem:[#allocation2] sm:$0xf]
    %v45 = vld [vmem:[#allocation2 + $0x4] sm:$0xf]
    %v46 = vld [vmem:[#allocation2 + $0x8] sm:$0xf]
    %v47 = vld [vmem:[#allocation2 + $0xc] sm:$0xf]
    %v48 = vld [vmem:[#allocation2 + $0x10] sm:$0xf]
    %v49 = vld [vmem:[#allocation2 + $0x14] sm:$0xf]
    %v50 = vld [vmem:[#allocation2 + $0x18] sm:$0xf]
    %v51 = vld [vmem:[#allocation2 + $0x1c] sm:$0xf]
    %v52 = vld [vmem:[#allocation5] sm:$0xff]
    %v53 = vld [vmem:[#allocation5 + $0x8] sm:$0xff]
    %v54 = vld [vmem:[#allocation5 + $0x10] sm:$0xff]
    %v55 = vld [vmem:[#allocation5 + $0x18] sm:$0xff]
    %v56 = vld [vmem:[#allocation5 + $0x20] sm:$0xff]
    %v57 = vld [vmem:[#allocation5 + $0x28] sm:$0xff]
    %v58 = vld [vmem:[#allocation5 + $0x30] sm:$0xff]
    %v59 = vld [vmem:[#allocation5 + $0x38] sm:$0xff]
    %v60 = vld [vmem:[%s2] sm:$0x3]
    %v62 = vlaneseq
    %v63 = vshrl.u32 %v62, 7
    %v64 = vsub.s32 0, %v63
    %v65 = vrot.slane %v60, %v64
    %v66 = vlaneseq
    %v67 = vshrl.u32 %v66, 7
    %v68 = vsub.s32 1, %v67
    %v69 = vrot.slane %v60, %v68
    %v80 = vunpack.c.l.b16 %v44
    %v81 = vunpack.c.l.b16 %v45
    %v82 = vunpack.c.l.b16 %v46
    %v83 = vunpack.c.l.b16 %v47
    %v84 = vunpack.c.l.b16 %v48
    %v85 = vunpack.c.l.b16 %v49
    %v86 = vunpack.c.l.b16 %v50
    %v87 = vunpack.c.l.b16 %v51
    %v88 = vpack.c.b16 %v81, %v80
    %v89 = vpack.c.b16 %v83, %v82
    %v90 = vpack.c.b16 %v85, %v84
    %v91 = vpack.c.b16 %v87, %v86
    %v100 = vunpack.c.l.b16 %v52
    %v101 = vunpack.c.h.b16 %v52
    %v102 = vunpack.c.l.b16 %v53
    %v103 = vunpack.c.h.b16 %v53
    %v104 = vunpack.c.l.b16 %v54
    %v105 = vunpack.c.h.b16 %v54
    %v106 = vunpack.c.l.b16 %v55
    %v107 = vunpack.c.h.b16 %v55
    %v108 = vunpack.c.l.b16 %v56
    %v109 = vunpack.c.h.b16 %v56
    %v110 = vunpack.c.l.b16 %v57
    %v111 = vunpack.c.h.b16 %v57
    %v112 = vunpack.c.l.b16 %v58
    %v113 = vunpack.c.h.b16 %v58
    %v114 = vunpack.c.l.b16 %v59
    %v115 = vunpack.c.h.b16 %v59
    %v116 = vpack.c.b16 %v102, %v100
    %v117 = vpack.c.b16 %v103, %v101
    %v118 = vpack.c.b16 %v106, %v104
    %v119 = vpack.c.b16 %v107, %v105
    %v120 = vpack.c.b16 %v110, %v108
    %v121 = vpack.c.b16 %v111, %v109
    %v122 = vpack.c.b16 %v114, %v112
    %v123 = vpack.c.b16 %v115, %v113
    %vm132 = vcmask 523264
    %v134 = vsel %vm132, %v88, 0
    %v137 = vsel %vm132, %v89, 0
    %v140 = vsel %vm132, %v90, 0
    %v143 = vsel %vm132, %v91, 0
    %145 = vmatprep.subr.bf16.mxu0 %v117
    %146 = vmatpush1.bf16.msra.mxu0 %v116
    %147 = vmatprep.subr.bf16.mxu0 %v119
    %148 = vmatpush1.bf16.msra.mxu0 %v118
    %149 = vmatprep.subr.bf16.mxu0 %v121
    %150 = vmatpush1.bf16.msra.mxu0 %v120
    %151 = vmatprep.subr.bf16.mxu0 %v123
    %152 = vmatpush1.bf16.msra.mxu0 %v122
    %153 = vmatprep.subr.bf16.mxu0 0
    %154 = vmatpush1.bf16.msra.mxu0 0
    %155 = vmatprep.subr.bf16.mxu0 0
    %156 = vmatpush1.bf16.msra.mxu0 0
    %157 = vmatprep.subr.bf16.mxu0 0
    %158 = vmatpush1.bf16.msra.mxu0 0
    %159 = vmatprep.subr.bf16.mxu0 0
    %160 = vmatpush1.bf16.msra.mxu0 0
    %161 = vmatprep.subr.bf16.mxu0 0
    %162 = vmatpush1.bf16.msra.mxu0 0
    %163 = vmatprep.subr.bf16.mxu0 0
    %164 = vmatpush1.bf16.msra.mxu0 0
    %165 = vmatprep.subr.bf16.mxu0 0
    %166 = vmatpush1.bf16.msra.mxu0 0
    %167 = vmatprep.subr.bf16.mxu0 0
    %168 = vmatpush1.bf16.msra.mxu0 0
    %169 = vmatprep.subr.bf16.mxu0 0
    %170 = vmatpush1.bf16.msra.mxu0 0
    %171 = vmatprep.subr.bf16.mxu0 0
    %172 = vmatpush1.bf16.msra.mxu0 0
    %173 = vmatprep.subr.bf16.mxu0 0
    %174 = vmatpush1.bf16.msra.mxu0 0
    %175 = vmatprep.subr.bf16.mxu0 0
    %176 = vmatpush1.bf16.msra.mxu0 0
    %177 = vmatprep.mubr.bf16.mxu0 0
    %178 = vmatmul.mubr.bf16.gmra.mrb[0].mxu0 %v134
    %v179 = vpop.f32.mrb[0].mxu0
    %v180 = vadd.f32 %v65, %v179
    %v181 = vpop.f32.mrb[0].mxu0
    %v182 = vadd.f32 %v69, %v181
    %v183 = vpop.f32.mrb[0].mxu0
    %v184 = vadd.f32 %v65, %v183
    %v185 = vpop.f32.mrb[0].mxu0
    %v186 = vadd.f32 %v69, %v185
    %187 = vmatprep.mubr.bf16.mxu0 0
    %188 = vmatmul.mubr.bf16.gmra.mrb[0].mxu0 %v137
    %v189 = vpop.f32.mrb[0].mxu0
    %v190 = vadd.f32 %v65, %v189
    %v191 = vpop.f32.mrb[0].mxu0
    %v192 = vadd.f32 %v69, %v191
    %v193 = vpop.f32.mrb[0].mxu0
    %v194 = vadd.f32 %v65, %v193
    %v195 = vpop.f32.mrb[0].mxu0
    %v196 = vadd.f32 %v69, %v195
    %197 = vmatprep.mubr.bf16.mxu0 0
    %198 = vmatmul.mubr.bf16.gmra.mrb[0].mxu0 %v140
    %v199 = vpop.f32.mrb[0].mxu0
    %v200 = vadd.f32 %v65, %v199
    %v201 = vpop.f32.mrb[0].mxu0
    %v202 = vadd.f32 %v69, %v201
    %v203 = vpop.f32.mrb[0].mxu0
    %v204 = vadd.f32 %v65, %v203
    %v205 = vpop.f32.mrb[0].mxu0
    %v206 = vadd.f32 %v69, %v205
    %207 = vmatprep.mubr.bf16.mxu0 0
    %208 = vmatmul.mubr.bf16.gmra.mrb[0].mxu0 %v143
    %v209 = vpop.f32.mrb[0].mxu0
    %v210 = vadd.f32 %v65, %v209
    %v211 = vpop.f32.mrb[0].mxu0
    %v212 = vadd.f32 %v69, %v211
    %v213 = vpop.f32.mrb[0].mxu0
    %v214 = vadd.f32 %v65, %v213
    %v215 = vpop.f32.mrb[0].mxu0
    %v216 = vadd.f32 %v69, %v215
    %217 = vdwg.mxu0
    %s218 = smul.u32 0, 64
    %v219 = vlaneseq
    %v220 = vshrl.u32 %v219, 7
    %v221 = vadd.s32 %v220, 8
    %v222 = vadd.s32 %v220, 16
    %v223 = vadd.s32 %v220, 24
    %v224 = vadd.s32 %v220, 32
    %v225 = vadd.s32 %v220, 40
    %v226 = vadd.s32 %v220, 48
    %v227 = vadd.s32 %v220, 56
    %v228 = vstv %s218
    %v229 = vadd.s32 %v228, %v220
    %v230 = vadd.s32 %v228, %v221
    %v231 = vadd.s32 %v228, %v222
    %v232 = vadd.s32 %v228, %v223
    %v233 = vadd.s32 %v228, %v224
    %v234 = vadd.s32 %v228, %v225
    %v235 = vadd.s32 %v228, %v226
    %v236 = vadd.s32 %v228, %v227
    %vm237 = vcmp.lt.s32.totalorder %v229, 64
    %vm238 = vcmp.lt.s32.totalorder %v230, 64
    %vm239 = vcmp.lt.s32.totalorder %v231, 64
    %vm240 = vcmp.lt.s32.totalorder %v232, 64
    %vm241 = vcmp.lt.s32.totalorder %v233, 64
    %vm242 = vcmp.lt.s32.totalorder %v234, 64
    %vm243 = vcmp.lt.s32.totalorder %v235, 64
    %vm244 = vcmp.lt.s32.totalorder %v236, 64
    %v245 = vsel %vm237, 1, 0
    %v246 = vsel %vm238, 1, 0
    %v247 = vsel %vm239, 1, 0
    %v248 = vsel %vm240, 1, 0
    %v249 = vsel %vm241, 1, 0
    %v250 = vsel %vm242, 1, 0
    %v251 = vsel %vm243, 1, 0
    %v252 = vsel %vm244, 1, 0
    %vm253 = vcmp.eq.s32.totalorder %v245, 1
    %vm254 = vcmp.eq.s32.totalorder %v246, 1
    %vm255 = vcmp.eq.s32.totalorder %v247, 1
    %vm256 = vcmp.eq.s32.totalorder %v248, 1
    %vm257 = vcmp.eq.s32.totalorder %v249, 1
    %vm258 = vcmp.eq.s32.totalorder %v250, 1
    %vm259 = vcmp.eq.s32.totalorder %v251, 1
    %vm260 = vcmp.eq.s32.totalorder %v252, 1
    %v261 = vsel %vm253, %v180, 0.0
    %v262 = vsel %vm253, %v182, 0.0
    %v263 = vsel %vm254, %v184, 0.0
    %v264 = vsel %vm254, %v186, 0.0
    %v265 = vsel %vm255, %v190, 0.0
    %v266 = vsel %vm255, %v192, 0.0
    %v267 = vsel %vm256, %v194, 0.0
    %v268 = vsel %vm256, %v196, 0.0
    %v269 = vsel %vm257, %v200, 0.0
    %v270 = vsel %vm257, %v202, 0.0
    %v271 = vsel %vm258, %v204, 0.0
    %v272 = vsel %vm258, %v206, 0.0
    %v273 = vsel %vm259, %v210, 0.0
    %v274 = vsel %vm259, %v212, 0.0
    %v275 = vsel %vm260, %v214, 0.0
    %v276 = vsel %vm260, %v216, 0.0
    %v277 = vpack.c.bf16 %v263, %v261
    %v278 = vpack.c.bf16 %v264, %v262
    %v279 = vpack.c.bf16 %v267, %v265
    %v280 = vpack.c.bf16 %v268, %v266
    %v281 = vpack.c.bf16 %v271, %v269
    %v282 = vpack.c.bf16 %v272, %v270
    %v283 = vpack.c.bf16 %v275, %v273
    %v284 = vpack.c.bf16 %v276, %v274
    %v293 = vunpack.c.l.b16 %v277
    %v294 = vunpack.c.l.b16 %v278
    %v295 = vunpack.c.h.b16 %v277
    %v296 = vunpack.c.h.b16 %v278
    %v297 = vunpack.c.l.b16 %v279
    %v298 = vunpack.c.l.b16 %v280
    %v299 = vunpack.c.h.b16 %v279
    %v300 = vunpack.c.h.b16 %v280
    %v301 = vunpack.c.l.b16 %v281
    %v302 = vunpack.c.l.b16 %v282
    %v303 = vunpack.c.h.b16 %v281
    %v304 = vunpack.c.h.b16 %v282
    %v305 = vunpack.c.l.b16 %v283
    %v306 = vunpack.c.l.b16 %v284
    %v307 = vunpack.c.h.b16 %v283
    %v308 = vunpack.c.h.b16 %v284
    %v309 = vpack.c.b16 %v294, %v293
    %v310 = vpack.c.b16 %v296, %v295
    %v311 = vpack.c.b16 %v298, %v297
    %v312 = vpack.c.b16 %v300, %v299
    %v313 = vpack.c.b16 %v302, %v301
    %v314 = vpack.c.b16 %v304, %v303
    %v315 = vpack.c.b16 %v306, %v305
    %v316 = vpack.c.b16 %v308, %v307
    %325 = vst [vmem:[#allocation7] sm:$0xff] %v309
    %326 = vst [vmem:[#allocation7 + $0x8] sm:$0xff] %v310
    %327 = vst [vmem:[#allocation7 + $0x10] sm:$0xff] %v311
    %328 = vst [vmem:[#allocation7 + $0x18] sm:$0xff] %v312
    %329 = vst [vmem:[#allocation7 + $0x20] sm:$0xff] %v313
    %330 = vst [vmem:[#allocation7 + $0x28] sm:$0xff] %v314
    %331 = vst [vmem:[#allocation7 + $0x30] sm:$0xff] %v315
    %332 = vst [vmem:[#allocation7 + $0x38] sm:$0xff] %v316
    // Predicated region
    $region22: #{tpu_custom_call.1} parent=1 // pred_check
      _
    $region23: #{tpu_custom_call.1} parent=1 // pred_check_branch
      %334 = sbr.rel (0) target = $region25
    $region24: #{tpu_custom_call.1} parent=1 // pred_region
      %s336 = ssub.s32 1024, 1024
      %337 = vsyncadd [#allocation4], %s336
      %s338 = sshll.u32 [#allocation7], 4
      %s339 = int_to_ptr.vmem [resolvable:$true] %s338
      %344 = dma.vmem_to_hbm [thread:$0]  %s339, 1024, %s3, [#allocation4], 128, 128, 8
    $region25: #{tpu_custom_call.1} parent=1 // pred_fallthru
      _
    // Predicated region
    $region26: #{tpu_custom_call.1} parent=1 // pred_check
      _
    $region27: #{tpu_custom_call.1} parent=1 // pred_check_branch
      %346 = sbr.rel (0) target = $region29
    $region28: #{tpu_custom_call.1} parent=1 // pred_region
      %347 = dma.done [#allocation4], 1024
    $region29: #{tpu_custom_call.1} parent=1 // pred_fallthru
      _
    %348 = vsyncpa [#allocation3], 1
    %349 = vsyncpa [#allocation6], 1
    %350 = vsyncpa [#allocation4], 1

</llo_original>
